<compile_context>
chip_gen: v7x
topology: tpu7x:2x2x1
jax: 0.10.0
libtpu: 0.0.40
codegen_flags: <defaults>
</compile_context>

<pallas_src>
import functools

import jax
import jax.numpy as jnp
from jax.experimental import pallas as pl
from jax.experimental.pallas import tpu as pltpu


def _round_up(x, m):
    return ((x + m - 1) // m) * m


def _qnet_kernel(x_ref, w1_ref, b1_ref, w2_ref, b2_ref, w3_ref, b3_ref, out_ref):
    # x_ref:  (T, S)      batch tile of states (S = state_size, tiny)
    # w1_ref: (S, H)  b1_ref: (1, H)
    # w2_ref: (H, H)  b2_ref: (1, H)
    # w3_ref: (H, P)  b3_ref: (1, P)   P = action dim padded to 128 lanes
    # out_ref: (T, P)
    x = x_ref[...]

    # ---- fc1 + ReLU on the VPU --------------------------------------------
    # K = state_size is tiny (2): statically unrolled broadcast FMAs instead
    # of an MXU pass whose contraction would be padded to 128.
    state_size = w1_ref.shape[0]
    acc = x[:, 0:1] * w1_ref[0:1, :]                        # (T,1)*(1,H) -> (T,H)
    for k in range(1, state_size):                          # static unroll
        acc = acc + x[:, k:k + 1] * w1_ref[k:k + 1, :]
    h1 = jnp.maximum(acc + b1_ref[...], 0.0)                # (T, H)

    # ---- fc2 + ReLU on the MXU (64x64 contraction) ------------------------
    h2 = jnp.dot(h1, w2_ref[...], preferred_element_type=jnp.float32)
    h2 = jnp.maximum(h2 + b2_ref[...], 0.0)                 # (T, H)

    # ---- fc3 on the MXU, lane-dense (padded-to-128) output ----------------
    q = jnp.dot(h2, w3_ref[...], preferred_element_type=jnp.float32)
    q = q + b3_ref[...]                                     # (T, P)

    out_ref[...] = q.astype(out_ref.dtype)                  # unmasked vst (P=128)


@functools.partial(jax.jit, static_argnames=("batch_tile",))
def qnetwork_forward(state, params, *, batch_tile=512):
    """state: (batch, state_size) float32. Returns (batch, action_size) q-values."""
    w1, b1 = params["w1"], params["b1"]            # (S, H), (1, H)
    w2, b2 = params["w2"], params["b2"]            # (H, H), (1, H)
    w3p, b3p = params["w3_pad"], params["b3_pad"]  # (H, 128), (1, 128)

    batch, state_size = state.shape
    hidden = w1.shape[1]
    out_pad = w3p.shape[1]                         # lane-dense output width (128)
    action_size = params["w3"].shape[1]            # static shape -> Python int

    # Batch tiling: whole (8-rounded) batch if small, else `batch_tile`-row tiles.
    tile = min(batch_tile, _round_up(batch, 8))
    padded_batch = _round_up(batch, tile)
    if padded_batch != batch:
        state = jnp.pad(state, ((0, padded_batch - batch), (0, 0)))
    grid = (padded_batch // tile,)

    # Advisory cost for the XLA scheduler.
    flops = 2 * padded_batch * (state_size * hidden + hidden * hidden + hidden * out_pad)
    bytes_accessed = 4 * (w1.size + b1.size + w2.size + b2.size + w3p.size + b3p.size
                          + padded_batch * (state_size + out_pad))
    cost = pl.CostEstimate(flops=flops, transcendentals=0,
                           bytes_accessed=bytes_accessed)

    q_padded = pl.pallas_call(
        _qnet_kernel,
        out_shape=jax.ShapeDtypeStruct((padded_batch, out_pad), jnp.float32),
        grid_spec=pltpu.PrefetchScalarGridSpec(
            num_scalar_prefetch=0,
            grid=grid,
            in_specs=[
                # Only the state tile advances with the grid.
                pl.BlockSpec((tile, state_size), lambda i: (i, 0)),
                # Weights/biases: constant block index -> stay VMEM-resident.
                pl.BlockSpec(w1.shape, lambda i: (0, 0)),
                pl.BlockSpec(b1.shape, lambda i: (0, 0)),
                pl.BlockSpec(w2.shape, lambda i: (0, 0)),
                pl.BlockSpec(b2.shape, lambda i: (0, 0)),
                pl.BlockSpec(w3p.shape, lambda i: (0, 0)),
                pl.BlockSpec(b3p.shape, lambda i: (0, 0)),
            ],
            out_specs=pl.BlockSpec((tile, out_pad), lambda i: (i, 0)),
        ),
        compiler_params=pltpu.CompilerParams(
            # Batch axis is embarrassingly parallel -> shards across the two
            # TensorCores on v7x; no-op on single-TC v5e/v6e.
            dimension_semantics=("parallel",),
        ),
        cost_estimate=cost,
    )(state, w1, b1, w2, b2, w3p, b3p)

    # Strip batch padding and the lane padding on the action dimension.
    return q_padded[:batch, :action_size]


def init_params(key, state_size=2, action_size=5, hidden_size=64, out_lane_pad=128):
    """Deterministic init mimicking PyTorch nn.Linear default (uniform ±1/sqrt(fan_in)).
    Weights stored transposed (in_features, out_features); fc3 weight/bias are
    zero-padded along the output dim to a lane-dense width (128)."""
    ks = jax.random.split(key, 6)

    def linear(kw, kb, fan_in, fan_out):
        bound = 1.0 / jnp.sqrt(jnp.float32(fan_in))
        w = jax.random.uniform(kw, (fan_in, fan_out), jnp.float32, -bound, bound)
        b = jax.random.uniform(kb, (1, fan_out), jnp.float32, -bound, bound)
        return w, b

    w1, b1 = linear(ks[0], ks[1], state_size, hidden_size)
    w2, b2 = linear(ks[2], ks[3], hidden_size, hidden_size)
    w3, b3 = linear(ks[4], ks[5], hidden_size, action_size)

    pad = out_lane_pad - action_size
    w3_pad = jnp.pad(w3, ((0, 0), (0, pad)))
    b3_pad = jnp.pad(b3, ((0, 0), (0, pad)))

    return {
        "w1": w1, "b1": b1,
        "w2": w2, "b2": b2,
        "w3": w3, "b3": b3,              # unpadded copies (reference math + static shapes)
        "w3_pad": w3_pad, "b3_pad": b3_pad,
    }


if __name__ == "__main__":
    key = jax.random.PRNGKey(0)
    k_params, k_state = jax.random.split(key)

    state_size, action_size, hidden_size, batch = 2, 5, 64, 8
    params = init_params(k_params, state_size, action_size, hidden_size)
    state = jax.random.normal(k_state, (batch, state_size), jnp.float32)

    q_values = qnetwork_forward(state, params)
    jax.block_until_ready(q_values)

    # Reference check in plain JAX (same math as the PyTorch module).
    def ref(x, p):
        h1 = jnp.maximum(x @ p["w1"] + p["b1"], 0.0)
        h2 = jnp.maximum(h1 @ p["w2"] + p["b2"], 0.0)
        return h2 @ p["w3"] + p["b3"]

    expected = ref(state, params)
    assert q_values.shape == (batch, action_size)
    assert jnp.allclose(q_values, expected, atol=1e-5, rtol=1e-5)

    # Larger-batch smoke test (exercises the batch grid / batch padding path).
    big_state = jax.random.normal(jax.random.PRNGKey(1), (1037, state_size), jnp.float32)
    q_big = qnetwork_forward(big_state, params)
    jax.block_until_ready(q_big)
    assert q_big.shape == (1037, action_size)
    assert jnp.allclose(q_big, ref(big_state, params), atol=1e-4, rtol=1e-4)

    print("KERNEL_OK")
</pallas_src>

<mosaic_0001>
module attributes {stable_mosaic.version = 11 : i64} {
  func.func @_qnet_kernel(%arg0: i32, %arg1: memref<8x2xf32, #tpu.memory_space<vmem>>, %arg2: memref<2x64xf32, #tpu.memory_space<vmem>>, %arg3: memref<1x64xf32, #tpu.memory_space<vmem>>, %arg4: memref<64x64xf32, #tpu.memory_space<vmem>>, %arg5: memref<1x64xf32, #tpu.memory_space<vmem>>, %arg6: memref<64x128xf32, #tpu.memory_space<vmem>>, %arg7: memref<1x128xf32, #tpu.memory_space<vmem>>, %arg8: memref<8x128xf32, #tpu.memory_space<vmem>>) attributes {dimension_semantics = [#tpu.dimension_semantics<parallel>], iteration_bounds = array<i64: 1>, scalar_prefetch = 0 : i64, scratch_operands = 0 : i64, tpu.core_type = #tpu.core_type<tc>, window_params = [{transform_indices = @transform_0, window_bounds = array<i64: 8, 2>}, {pipeline_mode = #tpu.pipeline_mode<synchronous>, transform_indices = @transform_1, window_bounds = array<i64: 2, 64>}, {pipeline_mode = #tpu.pipeline_mode<synchronous>, transform_indices = @transform_2, window_bounds = array<i64: 1, 64>}, {pipeline_mode = #tpu.pipeline_mode<synchronous>, transform_indices = @transform_3, window_bounds = array<i64: 64, 64>}, {pipeline_mode = #tpu.pipeline_mode<synchronous>, transform_indices = @transform_4, window_bounds = array<i64: 1, 64>}, {pipeline_mode = #tpu.pipeline_mode<synchronous>, transform_indices = @transform_5, window_bounds = array<i64: 64, 128>}, {pipeline_mode = #tpu.pipeline_mode<synchronous>, transform_indices = @transform_6, window_bounds = array<i64: 1, 128>}, {transform_indices = @transform_7, window_bounds = array<i64: 8, 128>}]} {
    %c0 = arith.constant 0 : index
    %c0_0 = arith.constant 0 : index
    %0 = vector.load %arg1[%c0, %c0_0] : memref<8x2xf32, #tpu.memory_space<vmem>>, vector<8x2xf32>
    %1 = vector.extract_strided_slice %0 {offsets = [0, 0], sizes = [8, 1], strides = [1, 1]} : vector<8x2xf32> to vector<8x1xf32>
    %c0_1 = arith.constant 0 : index
    %c0_2 = arith.constant 0 : index
    %2 = vector.load %arg2[%c0_1, %c0_2] : memref<2x64xf32, #tpu.memory_space<vmem>>, vector<1x64xf32>
    %3 = vector.broadcast %1 : vector<8x1xf32> to vector<8x64xf32>
    %4 = vector.broadcast %2 : vector<1x64xf32> to vector<8x64xf32>
    %5 = arith.mulf %3, %4 : vector<8x64xf32>
    %6 = vector.extract_strided_slice %0 {offsets = [0, 1], sizes = [8, 1], strides = [1, 1]} : vector<8x2xf32> to vector<8x1xf32>
    %c1 = arith.constant 1 : index
    %c0_3 = arith.constant 0 : index
    %7 = vector.load %arg2[%c1, %c0_3] : memref<2x64xf32, #tpu.memory_space<vmem>>, vector<1x64xf32>
    %8 = vector.broadcast %6 : vector<8x1xf32> to vector<8x64xf32>
    %9 = vector.broadcast %7 : vector<1x64xf32> to vector<8x64xf32>
    %10 = arith.mulf %8, %9 : vector<8x64xf32>
    %11 = arith.addf %5, %10 : vector<8x64xf32>
    %c0_4 = arith.constant 0 : index
    %c0_5 = arith.constant 0 : index
    %12 = vector.load %arg3[%c0_4, %c0_5] : memref<1x64xf32, #tpu.memory_space<vmem>>, vector<1x64xf32>
    %13 = vector.broadcast %12 : vector<1x64xf32> to vector<8x64xf32>
    %14 = arith.addf %11, %13 : vector<8x64xf32>
    %cst = arith.constant 0.000000e+00 : f32
    %15 = vector.broadcast %cst : f32 to vector<8x64xf32>
    %16 = arith.maximumf %14, %15 : vector<8x64xf32>
    %c0_6 = arith.constant 0 : index
    %c0_7 = arith.constant 0 : index
    %17 = vector.load %arg4[%c0_6, %c0_7] : memref<64x64xf32, #tpu.memory_space<vmem>>, vector<64x64xf32>
    %cst_8 = arith.constant dense<0.000000e+00> : vector<8x64xf32>
    %18 = tpu.matmul %16, %17, %cst_8 {dimension_numbers = #tpu.dot_dimension_numbers<[1], [0], [0], [1], [0, 0, 1, 1], [], []>} : vector<8x64xf32>, vector<64x64xf32>, vector<8x64xf32> -> vector<8x64xf32>
    %c0_9 = arith.constant 0 : index
    %c0_10 = arith.constant 0 : index
    %19 = vector.load %arg5[%c0_9, %c0_10] : memref<1x64xf32, #tpu.memory_space<vmem>>, vector<1x64xf32>
    %20 = vector.broadcast %19 : vector<1x64xf32> to vector<8x64xf32>
    %21 = arith.addf %18, %20 : vector<8x64xf32>
    %cst_11 = arith.constant 0.000000e+00 : f32
    %22 = vector.broadcast %cst_11 : f32 to vector<8x64xf32>
    %23 = arith.maximumf %21, %22 : vector<8x64xf32>
    %c0_12 = arith.constant 0 : index
    %c0_13 = arith.constant 0 : index
    %24 = vector.load %arg6[%c0_12, %c0_13] : memref<64x128xf32, #tpu.memory_space<vmem>>, vector<64x128xf32>
    %cst_14 = arith.constant dense<0.000000e+00> : vector<8x128xf32>
    %25 = tpu.matmul %23, %24, %cst_14 {dimension_numbers = #tpu.dot_dimension_numbers<[1], [0], [0], [1], [0, 0, 1, 1], [], []>} : vector<8x64xf32>, vector<64x128xf32>, vector<8x128xf32> -> vector<8x128xf32>
    %c0_15 = arith.constant 0 : index
    %c0_16 = arith.constant 0 : index
    %26 = vector.load %arg7[%c0_15, %c0_16] : memref<1x128xf32, #tpu.memory_space<vmem>>, vector<1x128xf32>
    %27 = vector.broadcast %26 : vector<1x128xf32> to vector<8x128xf32>
    %28 = arith.addf %25, %27 : vector<8x128xf32>
    %c0_17 = arith.constant 0 : index
    %c0_18 = arith.constant 0 : index
    %29 = vector.load %arg8[%c0_17, %c0_18] : memref<8x128xf32, #tpu.memory_space<vmem>>, vector<8x128xf32>
    tpu.vector_store %arg8[%c0_17, %c0_18], %28 {strides = array<i32>} : memref<8x128xf32, #tpu.memory_space<vmem>>, vector<8x128xf32>,
    return
  }
  func.func @transform_0(%arg0: i32) -> (i32, i32) {
    %c0_i32 = arith.constant 0 : i32
    %c0_i32_0 = arith.constant 0 : i32
    return %arg0, %c0_i32 : i32, i32
  }
  func.func @transform_1(%arg0: i32) -> (i32, i32) {
    %c0_i32 = arith.constant 0 : i32
    %c0_i32_0 = arith.constant 0 : i32
    %c0_i32_1 = arith.constant 0 : i32
    return %c0_i32, %c0_i32_0 : i32, i32
  }
  func.func @transform_2(%arg0: i32) -> (i32, i32) {
    %c0_i32 = arith.constant 0 : i32
    %c0_i32_0 = arith.constant 0 : i32
    %c0_i32_1 = arith.constant 0 : i32
    return %c0_i32, %c0_i32_0 : i32, i32
  }
  func.func @transform_3(%arg0: i32) -> (i32, i32) {
    %c0_i32 = arith.constant 0 : i32
    %c0_i32_0 = arith.constant 0 : i32
    %c0_i32_1 = arith.constant 0 : i32
    return %c0_i32, %c0_i32_0 : i32, i32
  }
  func.func @transform_4(%arg0: i32) -> (i32, i32) {
    %c0_i32 = arith.constant 0 : i32
    %c0_i32_0 = arith.constant 0 : i32
    %c0_i32_1 = arith.constant 0 : i32
    return %c0_i32, %c0_i32_0 : i32, i32
  }
  func.func @transform_5(%arg0: i32) -> (i32, i32) {
    %c0_i32 = arith.constant 0 : i32
    %c0_i32_0 = arith.constant 0 : i32
    %c0_i32_1 = arith.constant 0 : i32
    return %c0_i32, %c0_i32_0 : i32, i32
  }
  func.func @transform_6(%arg0: i32) -> (i32, i32) {
    %c0_i32 = arith.constant 0 : i32
    %c0_i32_0 = arith.constant 0 : i32
    %c0_i32_1 = arith.constant 0 : i32
    return %c0_i32, %c0_i32_0 : i32, i32
  }
  func.func @transform_7(%arg0: i32) -> (i32, i32) {
    %c0_i32 = arith.constant 0 : i32
    %c0_i32_0 = arith.constant 0 : i32
    return %arg0, %c0_i32 : i32, i32
  }
}

</mosaic_0001>

<llo_original>
// kernel: qnetwork_forward.1
$region0: #{qnetwork_forward.1}
  #allocation0 [shape = 'u32[]', space=smem, size = 0x4, offset = 0x4, fixed_abs, tag = 'smem constant byte address 0x4 - core index']
  #allocation1 [shape = 'u32[144,128]{1,0:T(1,128)}', space=vmem, size = 0x12000, scoped, tag = 'internal scratch']
  %s0 = inlined_call_operand.vmem [shape: f32[8,2], index: 0, kind: input, shape index: {}]
  %s1 = inlined_call_operand.vmem [shape: f32[2,64], index: 1, kind: input, shape index: {}]
  %s2 = inlined_call_operand.vmem [shape: f32[1,64], index: 2, kind: input, shape index: {}]
  %s3 = inlined_call_operand.hbm [shape: f32[64,64], index: 3, kind: input, shape index: {}]
  %s4 = inlined_call_operand.vmem [shape: f32[1,64], index: 4, kind: input, shape index: {}]
  %s5 = inlined_call_operand.hbm [shape: f32[64,128], index: 5, kind: input, shape index: {}]
  %s6 = inlined_call_operand.vmem [shape: f32[1,128], index: 6, kind: input, shape index: {}]
  %s7 = inlined_call_operand.hbm [shape: f32[8,128], index: 7, kind: output, shape index: {}]
  %s8 = sld [smem:[#allocation0]]
  $region46: #{qnetwork_forward.1} parent=0
    _
  %s10 = ssub.s32 1, %s8
  %s11 = scalar_select 0, %s10, %s8
  $region1: #{qnetwork_forward.1} parent=0
    #allocation2 [shape = 'u8[32768]{0}', space=vmem, size = 0x8000, scoped, tag = 'input window, operand 3, single buffered']
    #allocation3 [shape = 's32[1]{0}', space=sflag, size = 0x4, scoped, tag = 'scoped memory for qnetwork_forward.1']
    #allocation4 [shape = 's32[1]{0}', space=sflag, size = 0x4, scoped, tag = 'scoped memory for qnetwork_forward.1']
    #allocation5 [shape = 'u8[32768]{0}', space=vmem, size = 0x8000, scoped, tag = 'input window, operand 5, single buffered']
    #allocation6 [shape = 's32[1]{0}', space=sflag, size = 0x4, scoped, tag = 'scoped memory for qnetwork_forward.1']
    #allocation7 [shape = 'u8[4096]{0}', space=vmem, size = 0x1000, scoped, tag = 'output window, operand 0, single buffered']
    %12 = vsyncpa [#allocation3], 0
    %13 = vsyncpa [#allocation6], 0
    %14 = vsyncpa [#allocation4], 0
    // Predicated region
    $region2: #{qnetwork_forward.1} parent=1 // pred_check
      _
    $region3: #{qnetwork_forward.1} parent=1 // pred_check_branch
      %16 = sbr.rel (0) target = $region5
    $region4: #{qnetwork_forward.1} parent=1 // pred_region
      _
    $region5: #{qnetwork_forward.1} parent=1 // pred_fallthru
      _
    // Predicated region
    $region6: #{qnetwork_forward.1} parent=1 // pred_check
      _
    $region7: #{qnetwork_forward.1} parent=1 // pred_check_branch
      %18 = sbr.rel (0) target = $region9
    $region8: #{qnetwork_forward.1} parent=1 // pred_region
      _
    $region9: #{qnetwork_forward.1} parent=1 // pred_fallthru
      _
    // Predicated region
    $region10: #{qnetwork_forward.1} parent=1 // pred_check
      _
    $region11: #{qnetwork_forward.1} parent=1 // pred_check_branch
      %20 = sbr.rel (0) target = $region13
    $region12: #{qnetwork_forward.1} parent=1 // pred_region
      _
    $region13: #{qnetwork_forward.1} parent=1 // pred_fallthru
      _
    // Predicated region
    $region14: #{qnetwork_forward.1} parent=1 // pred_check
      _
    $region15: #{qnetwork_forward.1} parent=1 // pred_check_branch
      %22 = sbr.rel (0) target = $region17
    $region16: #{qnetwork_forward.1} parent=1 // pred_region
      %s24 = ssub.s32 1024, 1024
      %25 = vsyncadd [#allocation3], %s24
      %s26 = sshll.u32 [#allocation2], 4
      %s27 = int_to_ptr.vmem [resolvable:$true] %s26
      %32 = dma.hbm_to_vmem [thread:$0]  %s3, 1024, %s27, [#allocation3], 128, 128, 8
    $region17: #{qnetwork_forward.1} parent=1 // pred_fallthru
      _
    // Predicated region
    $region18: #{qnetwork_forward.1} parent=1 // pred_check
      _
    $region19: #{qnetwork_forward.1} parent=1 // pred_check_branch
      %34 = sbr.rel (0) target = $region21
    $region20: #{qnetwork_forward.1} parent=1 // pred_region
      _
    $region21: #{qnetwork_forward.1} parent=1 // pred_fallthru
      _
    // Predicated region
    $region22: #{qnetwork_forward.1} parent=1 // pred_check
      _
    $region23: #{qnetwork_forward.1} parent=1 // pred_check_branch
      %36 = sbr.rel (0) target = $region25
    $region24: #{qnetwork_forward.1} parent=1 // pred_region
      %s38 = ssub.s32 1024, 1024
      %39 = vsyncadd [#allocation6], %s38
      %s40 = sshll.u32 [#allocation5], 4
      %s41 = int_to_ptr.vmem [resolvable:$true] %s40
      %46 = dma.hbm_to_vmem [thread:$0]  %s5, 1024, %s41, [#allocation6], 128, 128, 8
    $region25: #{qnetwork_forward.1} parent=1 // pred_fallthru
      _
    // Predicated region
    $region26: #{qnetwork_forward.1} parent=1 // pred_check
      _
    $region27: #{qnetwork_forward.1} parent=1 // pred_check_branch
      %48 = sbr.rel (0) target = $region29
    $region28: #{qnetwork_forward.1} parent=1 // pred_region
      _
    $region29: #{qnetwork_forward.1} parent=1 // pred_fallthru
      _
    // Predicated region
    $region30: #{qnetwork_forward.1} parent=1 // pred_check
      _
    $region31: #{qnetwork_forward.1} parent=1 // pred_check_branch
      %50 = sbr.rel (0) target = $region33
    $region32: #{qnetwork_forward.1} parent=1 // pred_region
      %51 = dma.done [#allocation3], 1024
    $region33: #{qnetwork_forward.1} parent=1 // pred_fallthru
      _
    // Predicated region
    $region34: #{qnetwork_forward.1} parent=1 // pred_check
      _
    $region35: #{qnetwork_forward.1} parent=1 // pred_check_branch
      %53 = sbr.rel (0) target = $region37
    $region36: #{qnetwork_forward.1} parent=1 // pred_region
      %54 = dma.done [#allocation6], 1024
    $region37: #{qnetwork_forward.1} parent=1 // pred_fallthru
      _
    %v55 = vld [vmem:[%s0] sm:$0xff]
    %v56 = vld [vmem:[%s1] sm:$0x1]
    %58 = vset.pattern.permute.xlu0 0
    %59 = vperm.xlu0 %58, %v55
    %v60 = vpop.permute.xlu0 %59
    %v62 = vlaneseq
    %v63 = vshrl.u32 %v62, 7
    %v64 = vsub.s32 0, %v63
    %v65 = vrot.slane %v56, %v64
    %v66 = vmul.f32 %v60, %v65
    %v67 = vld [vmem:[%s1 + $0x1] sm:$0x1]
    %68 = vset.pattern.permute.xlu0 1
    %69 = vperm.xlu0 %68, %v55
    %v70 = vpop.permute.xlu0 %69
    %v72 = vlaneseq
    %v73 = vshrl.u32 %v72, 7
    %v74 = vsub.s32 0, %v73
    %v75 = vrot.slane %v67, %v74
    %v76 = vmul.f32 %v70, %v75
    %v77 = vadd.f32 %v66, %v76
    %v78 = vld [vmem:[%s2] sm:$0x1]
    %v80 = vlaneseq
    %v81 = vshrl.u32 %v80, 7
    %v82 = vsub.s32 0, %v81
    %v83 = vrot.slane %v78, %v82
    %v85 = vadd.f32 %v77, %v83
    %v86 = vmax.f32 %v85, 0.0
    %v87 = vld [vmem:[#allocation2] sm:$0xff]
    %v88 = vld [vmem:[#allocation2 + $0x8] sm:$0xff]
    %v89 = vld [vmem:[#allocation2 + $0x10] sm:$0xff]
    %v90 = vld [vmem:[#allocation2 + $0x18] sm:$0xff]
    %v91 = vld [vmem:[#allocation2 + $0x20] sm:$0xff]
    %v92 = vld [vmem:[#allocation2 + $0x28] sm:$0xff]
    %v93 = vld [vmem:[#allocation2 + $0x30] sm:$0xff]
    %v94 = vld [vmem:[#allocation2 + $0x38] sm:$0xff]
    %v95 = vld [vmem:[%s4] sm:$0x1]
    %v97 = vlaneseq
    %v98 = vshrl.u32 %v97, 7
    %v99 = vsub.s32 0, %v98
    %v100 = vrot.slane %v95, %v99
    %vm102 = vcmask 523264
    %v104 = vsel %vm102, %v86, 0
    %106 = vmatprep.subr.mxu0 0.0
    %107 = vmatpush1.msra.mxu0 %v87
    %108 = vmatprep.subr.mxu0 0.0
    %109 = vmatpush1.msra.mxu0 %v88
    %110 = vmatprep.subr.mxu0 0.0
    %111 = vmatpush1.msra.mxu0 %v89
    %112 = vmatprep.subr.mxu0 0.0
    %113 = vmatpush1.msra.mxu0 %v90
    %114 = vmatprep.subr.mxu0 0.0
    %115 = vmatpush1.msra.mxu0 %v91
    %116 = vmatprep.subr.mxu0 0.0
    %117 = vmatpush1.msra.mxu0 %v92
    %118 = vmatprep.subr.mxu0 0.0
    %119 = vmatpush1.msra.mxu0 %v93
    %120 = vmatprep.subr.mxu0 0.0
    %121 = vmatpush1.msra.mxu0 %v94
    %122 = vmatprep.subr.mxu0 0.0
    %123 = vmatpush1.msra.mxu0 0.0
    %124 = vmatprep.subr.mxu0 0.0
    %125 = vmatpush1.msra.mxu0 0.0
    %126 = vmatprep.subr.mxu0 0.0
    %127 = vmatpush1.msra.mxu0 0.0
    %128 = vmatprep.subr.mxu0 0.0
    %129 = vmatpush1.msra.mxu0 0.0
    %130 = vmatprep.subr.mxu0 0.0
    %131 = vmatpush1.msra.mxu0 0.0
    %132 = vmatprep.subr.mxu0 0.0
    %133 = vmatpush1.msra.mxu0 0.0
    %134 = vmatprep.subr.mxu0 0.0
    %135 = vmatpush1.msra.mxu0 0.0
    %136 = vmatprep.subr.mxu0 0.0
    %137 = vmatpush1.msra.mxu0 0.0
    %138 = vmatprep.subr.mxu0 0.0
    %139 = vmatpush1.msra.mxu0 0.0
    %140 = vmatprep.subr.mxu0 0.0
    %141 = vmatpush1.msra.mxu0 0.0
    %142 = vmatprep.subr.mxu0 0.0
    %143 = vmatpush1.msra.mxu0 0.0
    %144 = vmatprep.subr.mxu0 0.0
    %145 = vmatpush1.msra.mxu0 0.0
    %146 = vmatprep.subr.mxu0 0.0
    %147 = vmatpush1.msra.mxu0 0.0
    %148 = vmatprep.subr.mxu0 0.0
    %149 = vmatpush1.msra.mxu0 0.0
    %150 = vmatprep.subr.mxu0 0.0
    %151 = vmatpush1.msra.mxu0 0.0
    %152 = vmatprep.subr.mxu0 0.0
    %153 = vmatpush1.msra.mxu0 0.0
    %154 = vmatprep.subr.mxu0 0.0
    %155 = vmatpush1.msra.mxu0 0.0
    %156 = vmatprep.subr.mxu0 0.0
    %157 = vmatpush1.msra.mxu0 0.0
    %158 = vmatprep.subr.mxu0 0.0
    %159 = vmatpush1.msra.mxu0 0.0
    %160 = vmatprep.subr.mxu0 0.0
    %161 = vmatpush1.msra.mxu0 0.0
    %162 = vmatprep.subr.mxu0 0.0
    %163 = vmatpush1.msra.mxu0 0.0
    %164 = vmatprep.subr.mxu0 0.0
    %165 = vmatpush1.msra.mxu0 0.0
    %166 = vmatprep.subr.mxu0 0.0
    %167 = vmatpush1.msra.mxu0 0.0
    %168 = vmatprep.subr.mxu0 0.0
    %169 = vmatpush1.msra.mxu0 0.0
    %170 = vmatprep.mubr.f32.mxu0 0.0
    %171 = vmatmul.mubr.f32.gmra.mrb[0].mxu0 %v104
    %v172 = vpop.f32.mrb[0].mxu0
    %v173 = vadd.f32 %v100, %v172
    %v174 = vpop.f32.mrb[0].mxu0
    %175 = vdwg.mxu0
    %v176 = vmax.f32 %v173, 0.0
    %v177 = vld [vmem:[#allocation5] sm:$0xff]
    %v178 = vld [vmem:[#allocation5 + $0x8] sm:$0xff]
    %v179 = vld [vmem:[#allocation5 + $0x10] sm:$0xff]
    %v180 = vld [vmem:[#allocation5 + $0x18] sm:$0xff]
    %v181 = vld [vmem:[#allocation5 + $0x20] sm:$0xff]
    %v182 = vld [vmem:[#allocation5 + $0x28] sm:$0xff]
    %v183 = vld [vmem:[#allocation5 + $0x30] sm:$0xff]
    %v184 = vld [vmem:[#allocation5 + $0x38] sm:$0xff]
    %v185 = vld [vmem:[%s6] sm:$0x1]
    %v187 = vlaneseq
    %v188 = vshrl.u32 %v187, 7
    %v189 = vsub.s32 0, %v188
    %v190 = vrot.slane %v185, %v189
    %v193 = vsel %vm102, %v176, 0
    %195 = vmatprep.subr.mxu0 0.0
    %196 = vmatpush1.msra.mxu0 %v177
    %197 = vmatprep.subr.mxu0 0.0
    %198 = vmatpush1.msra.mxu0 %v178
    %199 = vmatprep.subr.mxu0 0.0
    %200 = vmatpush1.msra.mxu0 %v179
    %201 = vmatprep.subr.mxu0 0.0
    %202 = vmatpush1.msra.mxu0 %v180
    %203 = vmatprep.subr.mxu0 0.0
    %204 = vmatpush1.msra.mxu0 %v181
    %205 = vmatprep.subr.mxu0 0.0
    %206 = vmatpush1.msra.mxu0 %v182
    %207 = vmatprep.subr.mxu0 0.0
    %208 = vmatpush1.msra.mxu0 %v183
    %209 = vmatprep.subr.mxu0 0.0
    %210 = vmatpush1.msra.mxu0 %v184
    %211 = vmatprep.subr.mxu0 0.0
    %212 = vmatpush1.msra.mxu0 0.0
    %213 = vmatprep.subr.mxu0 0.0
    %214 = vmatpush1.msra.mxu0 0.0
    %215 = vmatprep.subr.mxu0 0.0
    %216 = vmatpush1.msra.mxu0 0.0
    %217 = vmatprep.subr.mxu0 0.0
    %218 = vmatpush1.msra.mxu0 0.0
    %219 = vmatprep.subr.mxu0 0.0
    %220 = vmatpush1.msra.mxu0 0.0
    %221 = vmatprep.subr.mxu0 0.0
    %222 = vmatpush1.msra.mxu0 0.0
    %223 = vmatprep.subr.mxu0 0.0
    %224 = vmatpush1.msra.mxu0 0.0
    %225 = vmatprep.subr.mxu0 0.0
    %226 = vmatpush1.msra.mxu0 0.0
    %227 = vmatprep.subr.mxu0 0.0
    %228 = vmatpush1.msra.mxu0 0.0
    %229 = vmatprep.subr.mxu0 0.0
    %230 = vmatpush1.msra.mxu0 0.0
    %231 = vmatprep.subr.mxu0 0.0
    %232 = vmatpush1.msra.mxu0 0.0
    %233 = vmatprep.subr.mxu0 0.0
    %234 = vmatpush1.msra.mxu0 0.0
    %235 = vmatprep.subr.mxu0 0.0
    %236 = vmatpush1.msra.mxu0 0.0
    %237 = vmatprep.subr.mxu0 0.0
    %238 = vmatpush1.msra.mxu0 0.0
    %239 = vmatprep.subr.mxu0 0.0
    %240 = vmatpush1.msra.mxu0 0.0
    %241 = vmatprep.subr.mxu0 0.0
    %242 = vmatpush1.msra.mxu0 0.0
    %243 = vmatprep.subr.mxu0 0.0
    %244 = vmatpush1.msra.mxu0 0.0
    %245 = vmatprep.subr.mxu0 0.0
    %246 = vmatpush1.msra.mxu0 0.0
    %247 = vmatprep.subr.mxu0 0.0
    %248 = vmatpush1.msra.mxu0 0.0
    %249 = vmatprep.subr.mxu0 0.0
    %250 = vmatpush1.msra.mxu0 0.0
    %251 = vmatprep.subr.mxu0 0.0
    %252 = vmatpush1.msra.mxu0 0.0
    %253 = vmatprep.subr.mxu0 0.0
    %254 = vmatpush1.msra.mxu0 0.0
    %255 = vmatprep.subr.mxu0 0.0
    %256 = vmatpush1.msra.mxu0 0.0
    %257 = vmatprep.subr.mxu0 0.0
    %258 = vmatpush1.msra.mxu0 0.0
    %259 = vmatprep.mubr.f32.mxu0 0.0
    %260 = vmatmul.mubr.f32.gmra.mrb[0].mxu0 %v193
    %v261 = vpop.f32.mrb[0].mxu0
    %v262 = vadd.f32 %v190, %v261
    %v263 = vpop.f32.mrb[0].mxu0
    %264 = vdwg.mxu0
    %265 = vst [vmem:[#allocation7] sm:$0xff] %v262
    // Predicated region
    $region38: #{qnetwork_forward.1} parent=1 // pred_check
      _
    $region39: #{qnetwork_forward.1} parent=1 // pred_check_branch
      %267 = sbr.rel (0) target = $region41
    $region40: #{qnetwork_forward.1} parent=1 // pred_region
      %s269 = ssub.s32 128, 128
      %270 = vsyncadd [#allocation4], %s269
      %s272 = sshll.u32 [#allocation7], 4
      %s273 = int_to_ptr.vmem [resolvable:$true] %s272
      %275 = dma.vmem_to_hbm [thread:$0]  %s273, 128, %s7, [#allocation4]
    $region41: #{qnetwork_forward.1} parent=1 // pred_fallthru
      _
    // Predicated region
    $region42: #{qnetwork_forward.1} parent=1 // pred_check
      _
    $region43: #{qnetwork_forward.1} parent=1 // pred_check_branch
      %277 = sbr.rel (0) target = $region45
    $region44: #{qnetwork_forward.1} parent=1 // pred_region
      %278 = dma.done [#allocation4], 128
    $region45: #{qnetwork_forward.1} parent=1 // pred_fallthru
      _
    %279 = vsyncpa [#allocation3], 1
    %280 = vsyncpa [#allocation6], 1
    %281 = vsyncpa [#allocation4], 1

</llo_original>
